<compile_context>
chip_gen: v6e
topology: v6e:2x2x1
jax: 0.10.0
libtpu: 0.0.40
codegen_flags: <defaults>
</compile_context>

<pallas_src>
import jax
import jax.numpy as jnp
from jax.experimental import pallas as pl
from jax.experimental.pallas import tpu as pltpu


def combiner_kernel(feat_ref, cproj_ref, wc_ref, bc_ref, out_ref):
    """One grid step = Bt batch elements.

    feat_ref : (Bt, HW, C)  channels-last features
    cproj_ref: (Bt, 1, C)   command projection (MLP hoisted to the wrapper)
    wc_ref   : (C, C)       1x1-conv weight (Cin, Cout)
    bc_ref   : (1, C)       1x1-conv bias
    out_ref  : (Bt, HW, C)
    """
    Bt, HW, C = feat_ref.shape

    # ---- 1x1 conv == per-pixel linear; fold Bt into M so the MXU sees Bt*HW ----
    feats = feat_ref[...].reshape(Bt * HW, C)
    proj = jnp.dot(feats, wc_ref[...],
                   preferred_element_type=jnp.float32) + bc_ref[...]   # (Bt*HW, C)
    proj = proj.reshape(Bt, HW, C)

    # ---- channel-attention scores: lane-axis reduce (VPU/XLU), MXU stays free ----
    scores = jnp.sum(proj * cproj_ref[...], axis=-1, keepdims=True)    # (Bt, HW, 1)

    # ---- softmax over the spatial axis, per batch element, f32 ----
    m = jnp.max(scores, axis=1, keepdims=True)                         # (Bt, 1, 1)
    e = jnp.exp(scores - m)                                            # (Bt, HW, 1)
    s = jnp.sum(e, axis=1, keepdims=True)                              # (Bt, 1, 1)
    inv_s = pl.reciprocal(s, approx=True)                              # EUP slot

    # fuse 1/s into the final broadcast-multiply
    out_ref[...] = ((e * proj) * inv_s).astype(out_ref.dtype)


def _pick_batch_tile(B, HW):
    """Pick Bt (a divisor of B): prefer M = Bt*HW in [128, 256], then >=2 grid
    steps (so both v7x TensorCores get work), then the largest M."""
    divisors = [bt for bt in range(1, B + 1) if B % bt == 0]
    def score(bt):
        m = bt * HW
        return (128 <= m <= 256, (B // bt) >= 2, m)
    return max(divisors, key=score)


def combiner_channel_attention(features_nchw, command, wc, bc, w1, b1, w2, b2):
    """features_nchw: (B, C, H, W) f32; command: (B, D) f32.
    wc: (Cin, Cout) 1x1-conv weight (transposed vs torch), bc: (Cout,)
    w1: (D, Hid), b1: (Hid,), w2: (Hid, C), b2: (C,)."""
    B, C, H, W = features_nchw.shape
    HW = H * W

    # ---- command MLP hoisted out of the kernel (XLA batches it over B) ----
    h = jnp.maximum(command @ w1 + b1[None, :], 0.0)
    cproj = (h @ w2 + b2[None, :]).reshape(B, 1, C)

    # NCHW -> (B, HW, C) for the kernel (layout plumbing, not compute)
    feats = jnp.transpose(features_nchw, (0, 2, 3, 1)).reshape(B, HW, C)
    bc2 = bc.reshape(1, C)

    Bt = _pick_batch_tile(B, HW)
    grid = (B // Bt,)

    out = pl.pallas_call(
        combiner_kernel,
        out_shape=jax.ShapeDtypeStruct((B, HW, C), jnp.float32),
        grid_spec=pltpu.PrefetchScalarGridSpec(
            num_scalar_prefetch=0,
            grid=grid,
            in_specs=[
                pl.BlockSpec((Bt, HW, C), lambda b: (b, 0, 0)),   # features
                pl.BlockSpec((Bt, 1, C), lambda b: (b, 0, 0)),    # cproj
                pl.BlockSpec((C, C), lambda b: (0, 0)),           # conv weight
                pl.BlockSpec((1, C), lambda b: (0, 0)),           # conv bias
            ],
            out_specs=pl.BlockSpec((Bt, HW, C), lambda b: (b, 0, 0)),
        ),
        compiler_params=pltpu.CompilerParams(
            dimension_semantics=("parallel",)),   # batch steps independent
    )(feats, cproj, wc, bc2)

    return jnp.transpose(out.reshape(B, H, W, C), (0, 3, 1, 2))


def reference(features_nchw, command, wc, bc, w1, b1, w2, b2):
    B, C, H, W = features_nchw.shape
    feats = jnp.transpose(features_nchw, (0, 2, 3, 1)).reshape(B, H * W, C)
    proj = feats @ wc + bc[None, None, :]                 # 1x1 conv
    h = jnp.maximum(command @ w1 + b1[None, :], 0.0)
    cproj = h @ w2 + b2[None, :]                          # (B, C)
    scores = jnp.einsum('bc,bnc->bn', cproj, proj)        # bmm
    sm = jax.nn.softmax(scores, axis=-1)                  # over H*W
    out = sm[..., None] * proj
    return jnp.transpose(out.reshape(B, H, W, C), (0, 3, 1, 2))


if __name__ == "__main__":
    B, C, H, W = 4, 128, 8, 8          # features_channels=128, spatial 8x8
    D, Hid = 64, 512                   # command_dim=64, MLP hidden fixed at 512

    key = jax.random.PRNGKey(0)
    ks = jax.random.split(key, 8)
    features = jax.random.normal(ks[0], (B, C, H, W), jnp.float32)
    command = jax.random.normal(ks[1], (B, D), jnp.float32)

    # deterministic synthetic parameters (no checkpoint load)
    wc = 0.05 * jax.random.normal(ks[2], (C, C), jnp.float32)   # 1x1 conv weight (Cin, Cout)
    bc = 0.05 * jax.random.normal(ks[3], (C,), jnp.float32)
    w1 = 0.05 * jax.random.normal(ks[4], (D, Hid), jnp.float32)
    b1 = 0.05 * jax.random.normal(ks[5], (Hid,), jnp.float32)
    w2 = 0.05 * jax.random.normal(ks[6], (Hid, C), jnp.float32)
    b2 = 0.05 * jax.random.normal(ks[7], (C,), jnp.float32)

    out = combiner_channel_attention(features, command, wc, bc, w1, b1, w2, b2)
    out = jax.block_until_ready(out)

    ref = reference(features, command, wc, bc, w1, b1, w2, b2)
    assert out.shape == (B, C, H, W)
    # tolerance slightly loosened vs pure-f32 because the softmax denominator
    # uses the EUP approximate reciprocal (pl.reciprocal(approx=True))
    assert jnp.allclose(out, ref, rtol=5e-3, atol=1e-4), "mismatch vs pure-JAX reference"

    # TODO(synk): 'text2conv' branch (per-sample dynamic conv filter) not implemented;
    # only the default 'channel_attention' + shared_command_fusion path is kernelized.
    print("KERNEL_OK")
</pallas_src>

<mosaic_0001>
module attributes {stable_mosaic.version = 11 : i64} {
  func.func @combiner_kernel(%arg0: i32, %arg1: memref<2x64x128xf32, #tpu.memory_space<vmem>>, %arg2: memref<2x1x128xf32, #tpu.memory_space<vmem>>, %arg3: memref<128x128xf32, #tpu.memory_space<vmem>>, %arg4: memref<1x128xf32, #tpu.memory_space<vmem>>, %arg5: memref<2x64x128xf32, #tpu.memory_space<vmem>>) attributes {dimension_semantics = [#tpu.dimension_semantics<parallel>], iteration_bounds = array<i64: 2>, scalar_prefetch = 0 : i64, scratch_operands = 0 : i64, tpu.core_type = #tpu.core_type<tc>, window_params = [{transform_indices = @transform_0, window_bounds = array<i64: 2, 64, 128>}, {transform_indices = @transform_1, window_bounds = array<i64: 2, 1, 128>}, {pipeline_mode = #tpu.pipeline_mode<synchronous>, transform_indices = @transform_2, window_bounds = array<i64: 128, 128>}, {pipeline_mode = #tpu.pipeline_mode<synchronous>, transform_indices = @transform_3, window_bounds = array<i64: 1, 128>}, {transform_indices = @transform_4, window_bounds = array<i64: 2, 64, 128>}]} {
    %c0 = arith.constant 0 : index
    %c0_0 = arith.constant 0 : index
    %c0_1 = arith.constant 0 : index
    %0 = vector.load %arg1[%c0, %c0_0, %c0_1] : memref<2x64x128xf32, #tpu.memory_space<vmem>>, vector<2x64x128xf32>
    %1 = vector.shape_cast %0 : vector<2x64x128xf32> to vector<128x128xf32>
    %c0_2 = arith.constant 0 : index
    %c0_3 = arith.constant 0 : index
    %2 = vector.load %arg3[%c0_2, %c0_3] : memref<128x128xf32, #tpu.memory_space<vmem>>, vector<128x128xf32>
    %cst = arith.constant dense<0.000000e+00> : vector<128x128xf32>
    %3 = tpu.matmul %1, %2, %cst {dimension_numbers = #tpu.dot_dimension_numbers<[1], [0], [0], [1], [0, 0, 1, 1], [], []>} : vector<128x128xf32>, vector<128x128xf32>, vector<128x128xf32> -> vector<128x128xf32>
    %c0_4 = arith.constant 0 : index
    %c0_5 = arith.constant 0 : index
    %4 = vector.load %arg4[%c0_4, %c0_5] : memref<1x128xf32, #tpu.memory_space<vmem>>, vector<1x128xf32>
    %5 = vector.broadcast %4 : vector<1x128xf32> to vector<128x128xf32>
    %6 = arith.addf %3, %5 : vector<128x128xf32>
    %7 = vector.shape_cast %6 : vector<128x128xf32> to vector<2x64x128xf32>
    %c0_6 = arith.constant 0 : index
    %c0_7 = arith.constant 0 : index
    %c0_8 = arith.constant 0 : index
    %8 = vector.load %arg2[%c0_6, %c0_7, %c0_8] : memref<2x1x128xf32, #tpu.memory_space<vmem>>, vector<2x1x128xf32>
    %9 = vector.broadcast %8 : vector<2x1x128xf32> to vector<2x64x128xf32>
    %10 = arith.mulf %7, %9 : vector<2x64x128xf32>
    %cst_9 = arith.constant dense<0.000000e+00> : vector<2x64xf32>
    %11 = vector.multi_reduction <add>, %10, %cst_9 [2] : vector<2x64x128xf32> to vector<2x64xf32>
    %12 = vector.shape_cast %11 : vector<2x64xf32> to vector<2x64x1xf32>
    %cst_10 = arith.constant dense<0xFF800000> : vector<2x1xf32>
    %13 = vector.multi_reduction <maximumf>, %12, %cst_10 [1] : vector<2x64x1xf32> to vector<2x1xf32>
    %14 = vector.shape_cast %13 : vector<2x1xf32> to vector<2x1x1xf32>
    %15 = vector.broadcast %14 : vector<2x1x1xf32> to vector<2x64x1xf32>
    %16 = arith.subf %12, %15 : vector<2x64x1xf32>
    %17 = math.exp %16 : vector<2x64x1xf32>
    %cst_11 = arith.constant dense<0.000000e+00> : vector<2x1xf32>
    %18 = vector.multi_reduction <add>, %17, %cst_11 [1] : vector<2x64x1xf32> to vector<2x1xf32>
    %19 = vector.shape_cast %18 : vector<2x1xf32> to vector<2x1x1xf32>
    %20 = tpu.reciprocal %19 {approx = true} : vector<2x1x1xf32> -> vector<2x1x1xf32>
    %21 = vector.broadcast %17 : vector<2x64x1xf32> to vector<2x64x128xf32>
    %22 = arith.mulf %21, %7 : vector<2x64x128xf32>
    %23 = vector.broadcast %20 : vector<2x1x1xf32> to vector<2x64x128xf32>
    %24 = arith.mulf %22, %23 : vector<2x64x128xf32>
    %c0_12 = arith.constant 0 : index
    %c0_13 = arith.constant 0 : index
    %c0_14 = arith.constant 0 : index
    %25 = vector.load %arg5[%c0_12, %c0_13, %c0_14] : memref<2x64x128xf32, #tpu.memory_space<vmem>>, vector<2x64x128xf32>
    tpu.vector_store %arg5[%c0_12, %c0_13, %c0_14], %24 {strides = array<i32>} : memref<2x64x128xf32, #tpu.memory_space<vmem>>, vector<2x64x128xf32>,
    return
  }
  func.func @transform_0(%arg0: i32) -> (i32, i32, i32) {
    %c0_i32 = arith.constant 0 : i32
    %c0_i32_0 = arith.constant 0 : i32
    %c0_i32_1 = arith.constant 0 : i32
    return %arg0, %c0_i32, %c0_i32_0 : i32, i32, i32
  }
  func.func @transform_1(%arg0: i32) -> (i32, i32, i32) {
    %c0_i32 = arith.constant 0 : i32
    %c0_i32_0 = arith.constant 0 : i32
    %c0_i32_1 = arith.constant 0 : i32
    return %arg0, %c0_i32, %c0_i32_0 : i32, i32, i32
  }
  func.func @transform_2(%arg0: i32) -> (i32, i32) {
    %c0_i32 = arith.constant 0 : i32
    %c0_i32_0 = arith.constant 0 : i32
    %c0_i32_1 = arith.constant 0 : i32
    return %c0_i32, %c0_i32_0 : i32, i32
  }
  func.func @transform_3(%arg0: i32) -> (i32, i32) {
    %c0_i32 = arith.constant 0 : i32
    %c0_i32_0 = arith.constant 0 : i32
    %c0_i32_1 = arith.constant 0 : i32
    return %c0_i32, %c0_i32_0 : i32, i32
  }
  func.func @transform_4(%arg0: i32) -> (i32, i32, i32) {
    %c0_i32 = arith.constant 0 : i32
    %c0_i32_0 = arith.constant 0 : i32
    %c0_i32_1 = arith.constant 0 : i32
    return %arg0, %c0_i32, %c0_i32_0 : i32, i32, i32
  }
}

</mosaic_0001>

<llo_original>
// kernel: tpu_custom_call.1
$region0: #{tpu_custom_call.1}
  #allocation0 [shape = 'u32[]', space=smem, size = 0x4, offset = 0x4, fixed_abs, tag = 'smem constant byte address 0x4 - core index']
  #allocation1 [shape = 'u32[144,128]{1,0:T(1,128)}', space=vmem, size = 0x12000, scoped, tag = 'internal scratch']
  %s0 = inlined_call_operand.hbm [shape: f32[4,64,128], index: 0, kind: input, shape index: {}]
  %s1 = inlined_call_operand.hbm [shape: f32[4,1,128], index: 1, kind: input, shape index: {}]
  %s2 = inlined_call_operand.hbm [shape: f32[128,128], index: 2, kind: input, shape index: {}]
  %s3 = inlined_call_operand.vmem [shape: f32[1,128], index: 3, kind: input, shape index: {}]
  %s4 = inlined_call_operand.hbm [shape: f32[4,64,128], index: 4, kind: output, shape index: {}]
  %s5 = sld [smem:[#allocation0]]
  $region61: #{tpu_custom_call.1} parent=0
    _
  %s7 = ssub.s32 1, %s5
  %s8 = scalar_select 0, %s7, %s5
  $region1: #{tpu_custom_call.1} parent=0
    #allocation2 [shape = 'u8[131072]{0}', space=vmem, size = 0x20000, scoped, tag = 'input window, operand 0']
    #allocation3 [shape = 's32[2]{0}', space=sflag, size = 0x8, scoped, tag = 'scoped memory for tpu_custom_call.1']
    #allocation4 [shape = 's32[2]{0}', space=sflag, size = 0x8, scoped, tag = 'scoped memory for tpu_custom_call.1']
    #allocation5 [shape = 'u8[2048]{0}', space=vmem, size = 0x800, scoped, tag = 'input window, operand 1']
    #allocation6 [shape = 's32[2]{0}', space=sflag, size = 0x8, scoped, tag = 'scoped memory for tpu_custom_call.1']
    #allocation7 [shape = 'u8[65536]{0}', space=vmem, size = 0x10000, scoped, tag = 'input window, operand 2, single buffered']
    #allocation8 [shape = 'u8[131072]{0}', space=vmem, size = 0x20000, scoped, tag = 'output window, operand 0']
    %9 = vsyncpa [#allocation3], 0
    %s10 = scalar_lea.sflag [#allocation3], 1
    %11 = vsyncpa %s10, 0
    %12 = vsyncpa [#allocation6], 0
    %s13 = scalar_lea.sflag [#allocation6], 1
    %14 = vsyncpa %s13, 0
    %15 = vsyncpa [#allocation4], 0
    %s16 = scalar_lea.sflag [#allocation4], 1
    %17 = vsyncpa %s16, 0
    loop: start=0, step=1, limit=4
    $region2: #{tpu_custom_call.1} parent=1 // loop_pre_header
      _
    $region3: #{tpu_custom_call.1} parent=1 // loop_header
      %s19 = sphi 0, %s23
      %p20 = scmp.ge.s32.totalorder %s19, 4
      %s29 = sphi 0, %s31
      %s32 = sphi 0, %s29
      %s33 = sphi 0, %s32
      %s49 = sphi 0, %s33
      %s55 = sphi 0, %s57
      %s58 = sphi 0, %s55
      %s59 = sphi 0, %s58
      %s75 = sphi 0, %s59
      %s79 = sphi 0, %s79
      %s81 = sphi 0, %s79
      %s82 = sphi 0, %s81
      %s96 = sphi 0, %s82
      %s100 = sphi 0, %s100
      %s102 = sphi 0, %s100
      %s103 = sphi 0, %s102
      %s117 = sphi 0, %s103
      %s123 = sphi 0, %s125
      %s126 = sphi 0, %s123
      %s127 = sphi 0, %s126
      %s143 = sphi 0, %s127
    $region4: #{tpu_custom_call.1} parent=1 // loop_header_branch
      %22 = sbr.rel (%p20) target = $region8
    $region5: #{tpu_custom_call.1} parent=1 // loop_body
      %s24 = ssub.s32 %s19, 1
      %s25 = ssub.s32 %s19, 2
      %s26 = sadd.s32 %s19, 1
      %s27 = ssub.s32 %s19, %s26
      %p28 = scmp.eq.s32.totalorder %s27, 0
      %s30 = sadd.s32 %s29, 1
      %s31 = scalar_select %p28, %s29, %s30
      %p34 = pneg %p28
      %p35 = scmp.eq.s32.totalorder %s19, 1
      %p36 = por %p34, %p35
      %p37 = scmp.ne.s32.totalorder %s29, %s32
      %p38 = scmp.eq.s32.totalorder %s19, 0
      %p39 = por %p37, %p38
      %p40 = scmp.ne.s32.totalorder %s29, %s32
      %p41 = scmp.eq.s32.totalorder %s24, 1
      %p42 = por %p40, %p41
      %p43 = scmp.ne.s32.totalorder %s32, %s33
      %p44 = scmp.eq.s32.totalorder %s24, 0
      %p45 = por %p43, %p44
      %p46 = scmp.ne.s32.totalorder %s32, %s33
      %p47 = scmp.eq.s32.totalorder %s25, 1
      %p48 = por %p46, %p47
      %p50 = scmp.ne.s32.totalorder %s33, %s49
      %p51 = scmp.eq.s32.totalorder %s25, 0
      %p52 = por %p50, %p51
      %s53 = ssub.s32 %s19, %s26
      %p54 = scmp.eq.s32.totalorder %s53, 0
      %s56 = sadd.s32 %s55, 1
      %s57 = scalar_select %p54, %s55, %s56
      %p60 = pneg %p54
      %p61 = scmp.eq.s32.totalorder %s19, 1
      %p62 = por %p60, %p61
      %p63 = scmp.ne.s32.totalorder %s55, %s58
      %p64 = scmp.eq.s32.totalorder %s19, 0
      %p65 = por %p63, %p64
      %p66 = scmp.ne.s32.totalorder %s55, %s58
      %p67 = scmp.eq.s32.totalorder %s24, 1
      %p68 = por %p66, %p67
      %p69 = scmp.ne.s32.totalorder %s58, %s59
      %p70 = scmp.eq.s32.totalorder %s24, 0
      %p71 = por %p69, %p70
      %p72 = scmp.ne.s32.totalorder %s58, %s59
      %p73 = scmp.eq.s32.totalorder %s25, 1
      %p74 = por %p72, %p73
      %p76 = scmp.ne.s32.totalorder %s59, %s75
      %p77 = scmp.eq.s32.totalorder %s25, 0
      %p78 = por %p76, %p77
      %s80 = sadd.s32 %s79, 1
      %p83 = scmp.eq.s32.totalorder %s19, 1
      %p84 = scmp.ne.s32.totalorder %s79, %s81
      %p85 = scmp.eq.s32.totalorder %s19, 0
      %p86 = por %p84, %p85
      %p87 = scmp.ne.s32.totalorder %s79, %s81
      %p88 = scmp.eq.s32.totalorder %s24, 1
      %p89 = por %p87, %p88
      %p90 = scmp.ne.s32.totalorder %s81, %s82
      %p91 = scmp.eq.s32.totalorder %s24, 0
      %p92 = por %p90, %p91
      %p93 = scmp.ne.s32.totalorder %s81, %s82
      %p94 = scmp.eq.s32.totalorder %s25, 1
      %p95 = por %p93, %p94
      %p97 = scmp.ne.s32.totalorder %s82, %s96
      %p98 = scmp.eq.s32.totalorder %s25, 0
      %p99 = por %p97, %p98
      %s101 = sadd.s32 %s100, 1
      %p104 = scmp.eq.s32.totalorder %s19, 1
      %p105 = scmp.ne.s32.totalorder %s100, %s102
      %p106 = scmp.eq.s32.totalorder %s19, 0
      %p107 = por %p105, %p106
      %p108 = scmp.ne.s32.totalorder %s100, %s102
      %p109 = scmp.eq.s32.totalorder %s24, 1
      %p110 = por %p108, %p109
      %p111 = scmp.ne.s32.totalorder %s102, %s103
      %p112 = scmp.eq.s32.totalorder %s24, 0
      %p113 = por %p111, %p112
      %p114 = scmp.ne.s32.totalorder %s102, %s103
      %p115 = scmp.eq.s32.totalorder %s25, 1
      %p116 = por %p114, %p115
      %p118 = scmp.ne.s32.totalorder %s103, %s117
      %p119 = scmp.eq.s32.totalorder %s25, 0
      %p120 = por %p118, %p119
      %s121 = ssub.s32 %s19, %s26
      %p122 = scmp.eq.s32.totalorder %s121, 0
      %s124 = sadd.s32 %s123, 1
      %s125 = scalar_select %p122, %s123, %s124
      %p128 = pneg %p122
      %p129 = scmp.eq.s32.totalorder %s19, 1
      %p130 = por %p128, %p129
      %p131 = scmp.ne.s32.totalorder %s123, %s126
      %p132 = scmp.eq.s32.totalorder %s19, 0
      %p133 = por %p131, %p132
      %p134 = scmp.ne.s32.totalorder %s123, %s126
      %p135 = scmp.eq.s32.totalorder %s24, 1
      %p136 = por %p134, %p135
      %p137 = scmp.ne.s32.totalorder %s126, %s127
      %p138 = scmp.eq.s32.totalorder %s24, 0
      %p139 = por %p137, %p138
      %p140 = scmp.ne.s32.totalorder %s126, %s127
      %p141 = scmp.eq.s32.totalorder %s25, 1
      %p142 = por %p140, %p141
      %p144 = scmp.ne.s32.totalorder %s127, %s143
      %p145 = scmp.eq.s32.totalorder %s25, 0
      %p146 = por %p144, %p145
      %p147 = scmp.le.s32.totalorder 1, %s19
      %p148 = scmp.lt.s32.totalorder %s19, 3
      %p149 = pnand %p147, %p148
      %p150 = pneg %p149
      // Predicated region
      $region9: #{tpu_custom_call.1} parent=5 // pred_check
        _
      $region10: #{tpu_custom_call.1} parent=5 // pred_check_branch
        %152 = sbr.rel (%p149) target = $region12
      $region11: #{tpu_custom_call.1} parent=5 // pred_region
        %s153 = ssub.s32 %s19, 1
        // Predicated region
        $region13: #{tpu_custom_call.1} parent=11 // pred_check
          %p154 = pneg %p92
        $region14: #{tpu_custom_call.1} parent=11 // pred_check_branch
          %156 = sbr.rel (%p154) target = $region16
        $region15: #{tpu_custom_call.1} parent=11 // pred_region
          %s158 = ssub.s32 2048, 2048
          %159 = vsyncadd [#allocation6], %s158
          %s160 = sshll.u32 [#allocation7], 4
          %s161 = int_to_ptr.vmem [resolvable:$true] %s160
          %166 = dma.hbm_to_vmem [thread:$0]  %s2, 2048, %s161, [#allocation6], 128, 128, 8
        $region16: #{tpu_custom_call.1} parent=11 // pred_fallthru
          _
        // Predicated region
        $region17: #{tpu_custom_call.1} parent=11 // pred_check
          %p167 = pneg %p113
        $region18: #{tpu_custom_call.1} parent=11 // pred_check_branch
          %169 = sbr.rel (%p167) target = $region20
        $region19: #{tpu_custom_call.1} parent=11 // pred_region
          _
        $region20: #{tpu_custom_call.1} parent=11 // pred_fallthru
          _
      $region12: #{tpu_custom_call.1} parent=5 // pred_fallthru
        _
      %p170 = scmp.lt.s32.totalorder %s19, 2
      // Predicated region
      $region21: #{tpu_custom_call.1} parent=5 // pred_check
        %p171 = pneg %p170
      $region22: #{tpu_custom_call.1} parent=5 // pred_check_branch
        %173 = sbr.rel (%p171) target = $region24
      $region23: #{tpu_custom_call.1} parent=5 // pred_region
        // Predicated region
        $region25: #{tpu_custom_call.1} parent=23 // pred_check
          %p174 = pneg %p39
        $region26: #{tpu_custom_call.1} parent=23 // pred_check_branch
          %176 = sbr.rel (%p174) target = $region28
        $region27: #{tpu_custom_call.1} parent=23 // pred_region
          %s177 = sand.u32 %s29, 1
          %s178 = scalar_lea.sflag [#allocation3], %s177
          %s179 = sand.u32 %s29, 1
          %s180 = smul.addr %s179, 128
          %s181 = scalar_lea.vmem [#allocation2], %s180
          %s182 = smul.u32 2, %s19
          %s184 = ssub.s32 2048, 2048
          %185 = vsyncadd %s178, %s184
          %s186 = smul.addr %s182, 8
          %s187 = smul.addr %s186, 128
          %s188 = scalar_lea.hbm %s0, %s187
          %s189 = sshll.u32 %s181, 4
          %s190 = int_to_ptr.vmem [resolvable:$true] %s189
          %195 = dma.hbm_to_vmem [thread:$0]  %s188, 2048, %s190, %s178, 128, 128, 8
        $region28: #{tpu_custom_call.1} parent=23 // pred_fallthru
          _
        // Predicated region
        $region29: #{tpu_custom_call.1} parent=23 // pred_check
          %p196 = pneg %p65
        $region30: #{tpu_custom_call.1} parent=23 // pred_check_branch
          %198 = sbr.rel (%p196) target = $region32
        $region31: #{tpu_custom_call.1} parent=23 // pred_region
          %s199 = sand.u32 %s19, 1
          %s200 = scalar_lea.sflag [#allocation6], %s199
          %s201 = sand.u32 %s55, 1
          %s202 = smul.addr %s201, 2
          %s203 = scalar_lea.vmem [#allocation5], %s202
          %s204 = smul.u32 2, %s19
          %s206 = ssub.s32 32, 32
          %207 = vsyncadd %s200, %s206
          %s208 = smul.addr %s204, 16
          %s209 = scalar_lea.hbm %s1, %s208
          %s210 = sshll.u32 %s203, 4
          %s211 = int_to_ptr.vmem [resolvable:$true] %s210
          %216 = dma.hbm_to_vmem [thread:$0]  %s209, 32, %s211, %s200, 16, 16, 1
        $region32: #{tpu_custom_call.1} parent=23 // pred_fallthru
          _
      $region24: #{tpu_custom_call.1} parent=5 // pred_fallthru
        _
      %p217 = scmp.le.s32.totalorder 1, %s19
      %p218 = scmp.lt.s32.totalorder %s19, 3
      %p219 = pnand %p217, %p218
      %p220 = pneg %p219
      // Predicated region
      $region33: #{tpu_custom_call.1} parent=5 // pred_check
        _
      $region34: #{tpu_custom_call.1} parent=5 // pred_check_branch
        %222 = sbr.rel (%p219) target = $region36
      $region35: #{tpu_custom_call.1} parent=5 // pred_region
        %s223 = ssub.s32 %s19, 1
        %s224 = sand.u32 %s32, 1
        %s225 = scalar_lea.sflag [#allocation3], %s224
        %s226 = sand.u32 %s32, 1
        %s227 = smul.addr %s226, 128
        %s228 = scalar_lea.vmem [#allocation2], %s227
        // Predicated region
        $region37: #{tpu_custom_call.1} parent=35 // pred_check
          %p229 = pneg %p45
        $region38: #{tpu_custom_call.1} parent=35 // pred_check_branch
          %231 = sbr.rel (%p229) target = $region40
        $region39: #{tpu_custom_call.1} parent=35 // pred_region
          %232 = dma.done %s225, 2048
        $region40: #{tpu_custom_call.1} parent=35 // pred_fallthru
          _
        %s233 = sand.u32 %s24, 1
        %s234 = scalar_lea.sflag [#allocation6], %s233
        %s235 = sand.u32 %s58, 1
        %s236 = smul.addr %s235, 2
        %s237 = scalar_lea.vmem [#allocation5], %s236
        // Predicated region
        $region41: #{tpu_custom_call.1} parent=35 // pred_check
          %p238 = pneg %p71
        $region42: #{tpu_custom_call.1} parent=35 // pred_check_branch
          %240 = sbr.rel (%p238) target = $region44
        $region43: #{tpu_custom_call.1} parent=35 // pred_region
          %241 = dma.done %s234, 32
        $region44: #{tpu_custom_call.1} parent=35 // pred_fallthru
          _
        // Predicated region
        $region45: #{tpu_custom_call.1} parent=35 // pred_check
          %p242 = pneg %p92
        $region46: #{tpu_custom_call.1} parent=35 // pred_check_branch
          %244 = sbr.rel (%p242) target = $region48
        $region47: #{tpu_custom_call.1} parent=35 // pred_region
          %245 = dma.done [#allocation6], 2048
        $region48: #{tpu_custom_call.1} parent=35 // pred_fallthru
          _
        %s246 = sand.u32 %s32, 1
        %s247 = scalar_lea.sflag [#allocation3], %s246
        %s248 = sand.u32 %s32, 1
        %s249 = smul.addr %s248, 128
        %s250 = scalar_lea.vmem [#allocation2], %s249
        %p251 = pneg %p45
        %p252 = pneg %p42
        %s253 = sand.u32 %s24, 1
        %s254 = scalar_lea.sflag [#allocation6], %s253
        %s255 = sand.u32 %s58, 1
        %s256 = smul.addr %s255, 2
        %s257 = scalar_lea.vmem [#allocation5], %s256
        %p258 = pneg %p71
        %p259 = pneg %p68
        %p260 = pneg %p92
        %p261 = pneg %p89
        %p262 = pneg %p113
        %p263 = pneg %p110
        %p264 = pneg %p139
        %p265 = pneg %p136
        %s266 = sand.u32 %s126, 1
        %s267 = scalar_lea.sflag [#allocation4], %s266
        %s268 = sand.u32 %s126, 1
        %s269 = smul.addr %s268, 128
        %s270 = scalar_lea.vmem [#allocation8], %s269
        %s271 = smul.u32 2, %s24
        %s272 = smul.u32 2, %s24
        %s273 = smul.u32 2, %s24
        %v274 = vld [vmem:[%s228] sm:$0xff]
        %v275 = vld [vmem:[%s228 + $0x8] sm:$0xff]
        %v276 = vld [vmem:[%s228 + $0x10] sm:$0xff]
        %v277 = vld [vmem:[%s228 + $0x18] sm:$0xff]
        %v278 = vld [vmem:[%s228 + $0x20] sm:$0xff]
        %v279 = vld [vmem:[%s228 + $0x28] sm:$0xff]
        %v280 = vld [vmem:[%s228 + $0x30] sm:$0xff]
        %v281 = vld [vmem:[%s228 + $0x38] sm:$0xff]
        %v282 = vld [vmem:[%s228 + $0x40] sm:$0xff]
        %v283 = vld [vmem:[%s228 + $0x48] sm:$0xff]
        %v284 = vld [vmem:[%s228 + $0x50] sm:$0xff]
        %v285 = vld [vmem:[%s228 + $0x58] sm:$0xff]
        %v286 = vld [vmem:[%s228 + $0x60] sm:$0xff]
        %v287 = vld [vmem:[%s228 + $0x68] sm:$0xff]
        %v288 = vld [vmem:[%s228 + $0x70] sm:$0xff]
        %v289 = vld [vmem:[%s228 + $0x78] sm:$0xff]
        %v290 = vld [vmem:[#allocation7] sm:$0xff]
        %v291 = vld [vmem:[#allocation7 + $0x8] sm:$0xff]
        %v292 = vld [vmem:[#allocation7 + $0x10] sm:$0xff]
        %v293 = vld [vmem:[#allocation7 + $0x18] sm:$0xff]
        %v294 = vld [vmem:[#allocation7 + $0x20] sm:$0xff]
        %v295 = vld [vmem:[#allocation7 + $0x28] sm:$0xff]
        %v296 = vld [vmem:[#allocation7 + $0x30] sm:$0xff]
        %v297 = vld [vmem:[#allocation7 + $0x38] sm:$0xff]
        %v298 = vld [vmem:[#allocation7 + $0x40] sm:$0xff]
        %v299 = vld [vmem:[#allocation7 + $0x48] sm:$0xff]
        %v300 = vld [vmem:[#allocation7 + $0x50] sm:$0xff]
        %v301 = vld [vmem:[#allocation7 + $0x58] sm:$0xff]
        %v302 = vld [vmem:[#allocation7 + $0x60] sm:$0xff]
        %v303 = vld [vmem:[#allocation7 + $0x68] sm:$0xff]
        %v304 = vld [vmem:[#allocation7 + $0x70] sm:$0xff]
        %v305 = vld [vmem:[#allocation7 + $0x78] sm:$0xff]
        %v306 = vld [vmem:[%s3] sm:$0x1]
        %v308 = vlaneseq
        %v309 = vshrl.u32 %v308, 7
        %v310 = vsub.s32 0, %v309
        %v311 = vrot.slane %v306, %v310
        %313 = vmatprep.subr.mxu0 0.0
        %314 = vmatpush1.msra.mxu0 %v305
        %315 = vmatprep.subr.mxu0 0.0
        %316 = vmatpush1.msra.mxu0 %v304
        %317 = vmatprep.subr.mxu0 0.0
        %318 = vmatpush1.msra.mxu0 %v303
        %319 = vmatprep.subr.mxu0 0.0
        %320 = vmatpush1.msra.mxu0 %v302
        %321 = vmatprep.subr.mxu0 0.0
        %322 = vmatpush1.msra.mxu0 %v301
        %323 = vmatprep.subr.mxu0 0.0
        %324 = vmatpush1.msra.mxu0 %v300
        %325 = vmatprep.subr.mxu0 0.0
        %326 = vmatpush1.msra.mxu0 %v299
        %327 = vmatprep.subr.mxu0 0.0
        %328 = vmatpush1.msra.mxu0 %v298
        %329 = vmatprep.subr.mxu0 0.0
        %330 = vmatpush1.msra.mxu0 %v297
        %331 = vmatprep.subr.mxu0 0.0
        %332 = vmatpush1.msra.mxu0 %v296
        %333 = vmatprep.subr.mxu0 0.0
        %334 = vmatpush1.msra.mxu0 %v295
        %335 = vmatprep.subr.mxu0 0.0
        %336 = vmatpush1.msra.mxu0 %v294
        %337 = vmatprep.subr.mxu0 0.0
        %338 = vmatpush1.msra.mxu0 %v293
        %339 = vmatprep.subr.mxu0 0.0
        %340 = vmatpush1.msra.mxu0 %v292
        %341 = vmatprep.subr.mxu0 0.0
        %342 = vmatpush1.msra.mxu0 %v291
        %343 = vmatprep.subr.mxu0 0.0
        %344 = vmatpush1.msra.mxu0 %v290
        %345 = vmatprep.subr.mxu0 0.0
        %346 = vmatpush2.msra.mxu0 0.0
        %347 = vmatprep.subr.mxu0 0.0
        %348 = vmatpush2.msra.mxu0 0.0
        %349 = vmatprep.subr.mxu0 0.0
        %350 = vmatpush2.msra.mxu0 0.0
        %351 = vmatprep.subr.mxu0 0.0
        %352 = vmatpush2.msra.mxu0 0.0
        %353 = vmatprep.subr.mxu0 0.0
        %354 = vmatpush2.msra.mxu0 0.0
        %355 = vmatprep.subr.mxu0 0.0
        %356 = vmatpush2.msra.mxu0 0.0
        %357 = vmatprep.subr.mxu0 0.0
        %358 = vmatpush2.msra.mxu0 0.0
        %359 = vmatprep.subr.mxu0 0.0
        %360 = vmatpush2.msra.mxu0 0.0
        %361 = vmatprep.subr.mxu0 0.0
        %362 = vmatpush2.msra.mxu0 0.0
        %363 = vmatprep.subr.mxu0 0.0
        %364 = vmatpush2.msra.mxu0 0.0
        %365 = vmatprep.subr.mxu0 0.0
        %366 = vmatpush2.msra.mxu0 0.0
        %367 = vmatprep.subr.mxu0 0.0
        %368 = vmatpush2.msra.mxu0 0.0
        %369 = vmatprep.subr.mxu0 0.0
        %370 = vmatpush2.msra.mxu0 0.0
        %371 = vmatprep.subr.mxu0 0.0
        %372 = vmatpush2.msra.mxu0 0.0
        %373 = vmatprep.subr.mxu0 0.0
        %374 = vmatpush2.msra.mxu0 0.0
        %375 = vmatprep.subr.mxu0 0.0
        %376 = vmatpush2.msra.mxu0 0.0
        %377 = vmatprep.mubr.f32.mxu0 0.0
        %378 = vmatmul.mubr.f32.gmra.mxu0 %v274
        %v379 = vpop.f32.mrf.mxu0
        %v380 = vadd.f32 %v311, %v379
        %v381 = vpop.f32.mrf.mxu0
        %382 = vmatprep.mubr.f32.mxu0 0.0
        %383 = vmatmul.mubr.f32.gmra.mxu0 %v275
        %v384 = vpop.f32.mrf.mxu0
        %v385 = vadd.f32 %v311, %v384
        %v386 = vpop.f32.mrf.mxu0
        %387 = vmatprep.mubr.f32.mxu0 0.0
        %388 = vmatmul.mubr.f32.gmra.mxu0 %v276
        %v389 = vpop.f32.mrf.mxu0
        %v390 = vadd.f32 %v311, %v389
        %v391 = vpop.f32.mrf.mxu0
        %392 = vmatprep.mubr.f32.mxu0 0.0
        %393 = vmatmul.mubr.f32.gmra.mxu0 %v277
        %v394 = vpop.f32.mrf.mxu0
        %v395 = vadd.f32 %v311, %v394
        %v396 = vpop.f32.mrf.mxu0
        %397 = vmatprep.mubr.f32.mxu0 0.0
        %398 = vmatmul.mubr.f32.gmra.mxu0 %v278
        %v399 = vpop.f32.mrf.mxu0
        %v400 = vadd.f32 %v311, %v399
        %v401 = vpop.f32.mrf.mxu0
        %402 = vmatprep.mubr.f32.mxu0 0.0
        %403 = vmatmul.mubr.f32.gmra.mxu0 %v279
        %v404 = vpop.f32.mrf.mxu0
        %v405 = vadd.f32 %v311, %v404
        %v406 = vpop.f32.mrf.mxu0
        %407 = vmatprep.mubr.f32.mxu0 0.0
        %408 = vmatmul.mubr.f32.gmra.mxu0 %v280
        %v409 = vpop.f32.mrf.mxu0
        %v410 = vadd.f32 %v311, %v409
        %v411 = vpop.f32.mrf.mxu0
        %412 = vmatprep.mubr.f32.mxu0 0.0
        %413 = vmatmul.mubr.f32.gmra.mxu0 %v281
        %v414 = vpop.f32.mrf.mxu0
        %v415 = vadd.f32 %v311, %v414
        %v416 = vpop.f32.mrf.mxu0
        %417 = vmatprep.mubr.f32.mxu0 0.0
        %418 = vmatmul.mubr.f32.gmra.mxu0 %v282
        %v419 = vpop.f32.mrf.mxu0
        %v420 = vadd.f32 %v311, %v419
        %v421 = vpop.f32.mrf.mxu0
        %422 = vmatprep.mubr.f32.mxu0 0.0
        %423 = vmatmul.mubr.f32.gmra.mxu0 %v283
        %v424 = vpop.f32.mrf.mxu0
        %v425 = vadd.f32 %v311, %v424
        %v426 = vpop.f32.mrf.mxu0
        %427 = vmatprep.mubr.f32.mxu0 0.0
        %428 = vmatmul.mubr.f32.gmra.mxu0 %v284
        %v429 = vpop.f32.mrf.mxu0
        %v430 = vadd.f32 %v311, %v429
        %v431 = vpop.f32.mrf.mxu0
        %432 = vmatprep.mubr.f32.mxu0 0.0
        %433 = vmatmul.mubr.f32.gmra.mxu0 %v285
        %v434 = vpop.f32.mrf.mxu0
        %v435 = vadd.f32 %v311, %v434
        %v436 = vpop.f32.mrf.mxu0
        %437 = vmatprep.mubr.f32.mxu0 0.0
        %438 = vmatmul.mubr.f32.gmra.mxu0 %v286
        %v439 = vpop.f32.mrf.mxu0
        %v440 = vadd.f32 %v311, %v439
        %v441 = vpop.f32.mrf.mxu0
        %442 = vmatprep.mubr.f32.mxu0 0.0
        %443 = vmatmul.mubr.f32.gmra.mxu0 %v287
        %v444 = vpop.f32.mrf.mxu0
        %v445 = vadd.f32 %v311, %v444
        %v446 = vpop.f32.mrf.mxu0
        %447 = vmatprep.mubr.f32.mxu0 0.0
        %448 = vmatmul.mubr.f32.gmra.mxu0 %v288
        %v449 = vpop.f32.mrf.mxu0
        %v450 = vadd.f32 %v311, %v449
        %v451 = vpop.f32.mrf.mxu0
        %452 = vmatprep.mubr.f32.mxu0 0.0
        %453 = vmatmul.mubr.f32.gmra.mxu0 %v289
        %v454 = vpop.f32.mrf.mxu0
        %v455 = vadd.f32 %v311, %v454
        %v456 = vpop.f32.mrf.mxu0
        %457 = vdwg.mxu0
        %v458 = vld [vmem:[%s237] sm:$0x1]
        %v459 = vld [vmem:[%s237 + $0x1] sm:$0x1]
        %v462 = vlaneseq
        %v463 = vshrl.u32 %v462, 7
        %v464 = vsub.s32 0, %v463
        %v465 = vrot.slane %v458, %v464
        %v466 = vlaneseq
        %v467 = vshrl.u32 %v466, 7
        %v468 = vsub.s32 0, %v467
        %v469 = vrot.slane %v459, %v468
        %v472 = vmul.f32 %v380, %v465
        %v473 = vmul.f32 %v385, %v465
        %v474 = vmul.f32 %v390, %v465
        %v475 = vmul.f32 %v395, %v465
        %v476 = vmul.f32 %v400, %v465
        %v477 = vmul.f32 %v405, %v465
        %v478 = vmul.f32 %v410, %v465
        %v479 = vmul.f32 %v415, %v465
        %v480 = vmul.f32 %v420, %v469
        %v481 = vmul.f32 %v425, %v469
        %v482 = vmul.f32 %v430, %v469
        %v483 = vmul.f32 %v435, %v469
        %v484 = vmul.f32 %v440, %v469
        %v485 = vmul.f32 %v445, %v469
        %v486 = vmul.f32 %v450, %v469
        %v487 = vmul.f32 %v455, %v469
        %488 = vadd.xlane.f32.xlu0 %v472
        %v489 = vpop.xlane.xlu0 %488
        %490 = vadd.xlane.f32.xlu0 %v473
        %v491 = vpop.xlane.xlu0 %490
        %492 = vadd.xlane.f32.xlu0 %v474
        %v493 = vpop.xlane.xlu0 %492
        %494 = vadd.xlane.f32.xlu0 %v475
        %v495 = vpop.xlane.xlu0 %494
        %496 = vadd.xlane.f32.xlu0 %v476
        %v497 = vpop.xlane.xlu0 %496
        %498 = vadd.xlane.f32.xlu0 %v477
        %v499 = vpop.xlane.xlu0 %498
        %500 = vadd.xlane.f32.xlu0 %v478
        %v501 = vpop.xlane.xlu0 %500
        %502 = vadd.xlane.f32.xlu0 %v479
        %v503 = vpop.xlane.xlu0 %502
        %504 = vadd.xlane.f32.xlu0 %v480
        %v505 = vpop.xlane.xlu0 %504
        %506 = vadd.xlane.f32.xlu0 %v481
        %v507 = vpop.xlane.xlu0 %506
        %508 = vadd.xlane.f32.xlu0 %v482
        %v509 = vpop.xlane.xlu0 %508
        %510 = vadd.xlane.f32.xlu0 %v483
        %v511 = vpop.xlane.xlu0 %510
        %512 = vadd.xlane.f32.xlu0 %v484
        %v513 = vpop.xlane.xlu0 %512
        %514 = vadd.xlane.f32.xlu0 %v485
        %v515 = vpop.xlane.xlu0 %514
        %516 = vadd.xlane.f32.xlu0 %v486
        %v517 = vpop.xlane.xlu0 %516
        %518 = vadd.xlane.f32.xlu0 %v487
        %v519 = vpop.xlane.xlu0 %518
        %v520 = vmax.f32 %v489, %v493
        %v521 = vmax.f32 %v491, %v495
        %v522 = vmax.f32 %v520, %v497
        %v523 = vmax.f32 %v521, %v499
        %v524 = vmax.f32 %v522, %v501
        %v525 = vmax.f32 %v523, %v503
        %v526 = vmax.f32 %v524, %v525
        %v527 = vrot.slane %v526, 4
        %v528 = vmax.f32 %v526, %v527
        %v529 = vrot.slane %v528, 2
        %v530 = vmax.f32 %v528, %v529
        %v531 = vrot.slane %v530, 1
        %v532 = vmax.f32 %v530, %v531
        %v533 = vmax.f32 %v505, %v509
        %v534 = vmax.f32 %v507, %v511
        %v535 = vmax.f32 %v533, %v513
        %v536 = vmax.f32 %v534, %v515
        %v537 = vmax.f32 %v535, %v517
        %v538 = vmax.f32 %v536, %v519
        %v539 = vmax.f32 %v537, %v538
        %v540 = vrot.slane %v539, 4
        %v541 = vmax.f32 %v539, %v540
        %v542 = vrot.slane %v541, 2
        %v543 = vmax.f32 %v541, %v542
        %v544 = vrot.slane %v543, 1
        %v545 = vmax.f32 %v543, %v544
        %v546 = vsub.f32 %v489, %v532
        %v547 = vsub.f32 %v491, %v532
        %v548 = vsub.f32 %v493, %v532
        %v549 = vsub.f32 %v495, %v532
        %v550 = vsub.f32 %v497, %v532
        %v551 = vsub.f32 %v499, %v532
        %v552 = vsub.f32 %v501, %v532
        %v553 = vsub.f32 %v503, %v532
        %v554 = vsub.f32 %v505, %v545
        %v555 = vsub.f32 %v507, %v545
        %v556 = vsub.f32 %v509, %v545
        %v557 = vsub.f32 %v511, %v545
        %v558 = vsub.f32 %v513, %v545
        %v559 = vsub.f32 %v515, %v545
        %v560 = vsub.f32 %v517, %v545
        %v561 = vsub.f32 %v519, %v545
        %v562 = vmul.f32 %v546, 1.442695
        %v563 = vpow.pop %v562
        %v564 = vmul.f32 %v547, 1.442695
        %v565 = vpow.pop %v564
        %v566 = vmul.f32 %v548, 1.442695
        %v567 = vpow.pop %v566
        %v568 = vmul.f32 %v549, 1.442695
        %v569 = vpow.pop %v568
        %v570 = vmul.f32 %v550, 1.442695
        %v571 = vpow.pop %v570
        %v572 = vmul.f32 %v551, 1.442695
        %v573 = vpow.pop %v572
        %v574 = vmul.f32 %v552, 1.442695
        %v575 = vpow.pop %v574
        %v576 = vmul.f32 %v553, 1.442695
        %v577 = vpow.pop %v576
        %v578 = vmul.f32 %v554, 1.442695
        %v579 = vpow.pop %v578
        %v580 = vmul.f32 %v555, 1.442695
        %v581 = vpow.pop %v580
        %v582 = vmul.f32 %v556, 1.442695
        %v583 = vpow.pop %v582
        %v584 = vmul.f32 %v557, 1.442695
        %v585 = vpow.pop %v584
        %v586 = vmul.f32 %v558, 1.442695
        %v587 = vpow.pop %v586
        %v588 = vmul.f32 %v559, 1.442695
        %v589 = vpow.pop %v588
        %v590 = vmul.f32 %v560, 1.442695
        %v591 = vpow.pop %v590
        %v592 = vmul.f32 %v561, 1.442695
        %v593 = vpow.pop %v592
        %v594 = vadd.f32 %v563, %v565
        %v595 = vadd.f32 %v594, %v567
        %v596 = vadd.f32 %v595, %v569
        %v597 = vadd.f32 %v596, %v571
        %v598 = vadd.f32 %v597, %v573
        %v599 = vadd.f32 %v598, %v575
        %v600 = vadd.f32 %v599, %v577
        %v601 = vrot.slane %v600, 4
        %v602 = vadd.f32 %v600, %v601
        %v603 = vrot.slane %v602, 2
        %v604 = vadd.f32 %v602, %v603
        %v605 = vrot.slane %v604, 1
        %v606 = vadd.f32 %v604, %v605
        %v607 = vadd.f32 %v579, %v581
        %v608 = vadd.f32 %v607, %v583
        %v609 = vadd.f32 %v608, %v585
        %v610 = vadd.f32 %v609, %v587
        %v611 = vadd.f32 %v610, %v589
        %v612 = vadd.f32 %v611, %v591
        %v613 = vadd.f32 %v612, %v593
        %v614 = vrot.slane %v613, 4
        %v615 = vadd.f32 %v613, %v614
        %v616 = vrot.slane %v615, 2
        %v617 = vadd.f32 %v615, %v616
        %v618 = vrot.slane %v617, 1
        %v619 = vadd.f32 %v617, %v618
        %v620 = vrcp.pop %v606
        %v621 = vrcp.pop %v619
        %v622 = vmul.f32 %v563, %v380
        %v623 = vmul.f32 %v565, %v385
        %v624 = vmul.f32 %v567, %v390
        %v625 = vmul.f32 %v569, %v395
        %v626 = vmul.f32 %v571, %v400
        %v627 = vmul.f32 %v573, %v405
        %v628 = vmul.f32 %v575, %v410
        %v629 = vmul.f32 %v577, %v415
        %v630 = vmul.f32 %v579, %v420
        %v631 = vmul.f32 %v581, %v425
        %v632 = vmul.f32 %v583, %v430
        %v633 = vmul.f32 %v585, %v435
        %v634 = vmul.f32 %v587, %v440
        %v635 = vmul.f32 %v589, %v445
        %v636 = vmul.f32 %v591, %v450
        %v637 = vmul.f32 %v593, %v455
        %v638 = vmul.f32 %v622, %v620
        %v639 = vmul.f32 %v623, %v620
        %v640 = vmul.f32 %v624, %v620
        %v641 = vmul.f32 %v625, %v620
        %v642 = vmul.f32 %v626, %v620
        %v643 = vmul.f32 %v627, %v620
        %v644 = vmul.f32 %v628, %v620
        %v645 = vmul.f32 %v629, %v620
        %v646 = vmul.f32 %v630, %v621
        %v647 = vmul.f32 %v631, %v621
        %v648 = vmul.f32 %v632, %v621
        %v649 = vmul.f32 %v633, %v621
        %v650 = vmul.f32 %v634, %v621
        %v651 = vmul.f32 %v635, %v621
        %v652 = vmul.f32 %v636, %v621
        %v653 = vmul.f32 %v637, %v621
        %654 = vst [vmem:[%s270] sm:$0xff] %v638
        %655 = vst [vmem:[%s270 + $0x8] sm:$0xff] %v639
        %656 = vst [vmem:[%s270 + $0x10] sm:$0xff] %v640
        %657 = vst [vmem:[%s270 + $0x18] sm:$0xff] %v641
        %658 = vst [vmem:[%s270 + $0x20] sm:$0xff] %v642
        %659 = vst [vmem:[%s270 + $0x28] sm:$0xff] %v643
        %660 = vst [vmem:[%s270 + $0x30] sm:$0xff] %v644
        %661 = vst [vmem:[%s270 + $0x38] sm:$0xff] %v645
        %662 = vst [vmem:[%s270 + $0x40] sm:$0xff] %v646
        %663 = vst [vmem:[%s270 + $0x48] sm:$0xff] %v647
        %664 = vst [vmem:[%s270 + $0x50] sm:$0xff] %v648
        %665 = vst [vmem:[%s270 + $0x58] sm:$0xff] %v649
        %666 = vst [vmem:[%s270 + $0x60] sm:$0xff] %v650
        %667 = vst [vmem:[%s270 + $0x68] sm:$0xff] %v651
        %668 = vst [vmem:[%s270 + $0x70] sm:$0xff] %v652
        %669 = vst [vmem:[%s270 + $0x78] sm:$0xff] %v653
        %s670 = sand.u32 %s126, 1
        %s671 = scalar_lea.sflag [#allocation4], %s670
        %s672 = sand.u32 %s126, 1
        %s673 = smul.addr %s672, 128
        %s674 = scalar_lea.vmem [#allocation8], %s673
        // Predicated region
        $region49: #{tpu_custom_call.1} parent=35 // pred_check
          %p675 = pneg %p136
        $region50: #{tpu_custom_call.1} parent=35 // pred_check_branch
          %677 = sbr.rel (%p675) target = $region52
        $region51: #{tpu_custom_call.1} parent=35 // pred_region
          %s678 = smul.u32 2, %s24
          %s680 = ssub.s32 2048, 2048
          %681 = vsyncadd %s671, %s680
          %s682 = smul.addr %s678, 8
          %s683 = smul.addr %s682, 128
          %s684 = scalar_lea.hbm %s4, %s683
          %s685 = sshll.u32 %s674, 4
          %s686 = int_to_ptr.vmem [resolvable:$true] %s685
          %691 = dma.vmem_to_hbm [thread:$0]  %s686, 2048, %s684, %s671, 128, 128, 8
        $region52: #{tpu_custom_call.1} parent=35 // pred_fallthru
          _
      $region36: #{tpu_custom_call.1} parent=5 // pred_fallthru
        _
      %p692 = scmp.le.s32.totalorder 2, %s19
      // Predicated region
      $region53: #{tpu_custom_call.1} parent=5 // pred_check
        %p693 = pneg %p692
      $region54: #{tpu_custom_call.1} parent=5 // pred_check_branch
        %695 = sbr.rel (%p693) target = $region56
      $region55: #{tpu_custom_call.1} parent=5 // pred_region
        %s696 = ssub.s32 %s19, 2
        // Predicated region
        $region57: #{tpu_custom_call.1} parent=55 // pred_check
          %p697 = pneg %p142
        $region58: #{tpu_custom_call.1} parent=55 // pred_check_branch
          %699 = sbr.rel (%p697) target = $region60
        $region59: #{tpu_custom_call.1} parent=55 // pred_region
          %s700 = sand.u32 %s127, 1
          %s701 = scalar_lea.sflag [#allocation4], %s700
          %s702 = sand.u32 %s127, 1
          %s703 = smul.addr %s702, 128
          %s704 = scalar_lea.vmem [#allocation8], %s703
          %705 = dma.done %s701, 2048
        $region60: #{tpu_custom_call.1} parent=55 // pred_fallthru
          _
      $region56: #{tpu_custom_call.1} parent=5 // pred_fallthru
        _
    $region6: #{tpu_custom_call.1} parent=1 // loop_footer
      %s23 = sadd.s32 1, %s19
    $region7: #{tpu_custom_call.1} parent=1 // loop_footer_branch
      %18 = sbr.rel target = $region3
    $region8: #{tpu_custom_call.1} parent=1 // loop_exit
      _
    %706 = vsyncpa [#allocation3], 1
    %s707 = scalar_lea.sflag [#allocation3], 1
    %708 = vsyncpa %s707, 1
    %709 = vsyncpa [#allocation6], 1
    %s710 = scalar_lea.sflag [#allocation6], 1
    %711 = vsyncpa %s710, 1
    %712 = vsyncpa [#allocation4], 1
    %s713 = scalar_lea.sflag [#allocation4], 1
    %714 = vsyncpa %s713, 1

</llo_original>
